<compile_context>
chip_gen: v7x
topology: tpu7x:2x2x1
jax: 0.10.0
libtpu: 0.0.40
codegen_flags: <defaults>
</compile_context>

<pallas_src>
import jax
import jax.numpy as jnp
from jax.experimental import pallas as pl
from jax.experimental.pallas import tpu as pltpu

_LANES = 128
_SUBLANES = 8


def _round_up(x, m):
    return ((x + m - 1) // m) * m


def _round_down(x, m):
    return (x // m) * m


def sigmoid_loss(y_t, y_prime_t, reduction="mean", block_bytes=4 * 1024 * 1024):
    assert y_t.shape == y_prime_t.shape
    assert y_t.dtype == y_prime_t.dtype
    n = y_t.size
    dtype = y_t.dtype
    itemsize = jnp.dtype(dtype).itemsize

    # Sublane packing multiple: 8 rows for 32-bit, 16 for bf16, 32 for int8.
    sub_mult = _SUBLANES * max(1, 4 // itemsize)

    # ---- lane-dense slab; pad only when unavoidable -------------------------
    min_elems = sub_mult * _LANES
    slab_elems = max(_round_up(n, _LANES), min_elems)

    def to_slab(x):
        flat = jnp.ravel(x)  # free (contiguous); dtype stays as-is in HBM
        if slab_elems != n:
            # TODO(synk): this pad is a full HBM copy, but it only triggers
            # when n % 128 != 0 (or n is tiny).  A fully ragged-safe path
            # would use a 1-D block + in-kernel element mask, but the
            # 1-D -> (r, 8, 128) reshape is not guaranteed to lower cleanly
            # on all Mosaic versions, so we keep the rare-copy fallback.
            flat = jnp.pad(flat, (0, slab_elems - n))
        return flat.reshape(-1, _LANES)

    ya = to_slab(y_t)
    yb = to_slab(y_prime_t)
    rows = ya.shape[0]  # >= sub_mult

    # ---- tiling -------------------------------------------------------------
    # Tile sized by bytes: ~block_bytes per input per pipeline buffer.
    tr_cap = max(sub_mult, _round_down(block_bytes // (_LANES * itemsize), sub_mult))

    # Dual-TensorCore split (v7x) whenever each core gets a meaningful chunk.
    p = 2 if (rows >= 2 * sub_mult and rows * _LANES * itemsize >= (1 << 20)) else 1

    per_core = pl.cdiv(rows, p)
    tr = min(tr_cap, max(sub_mult, _round_down(per_core, sub_mult)))  # <= rows
    nblocks = pl.cdiv(rows, tr)      # real row-blocks covering the slab
    inner = pl.cdiv(nblocks, p)      # sequential steps per parallel slice
    needs_mask = (p * inner * tr != rows)   # partial / phantom blocks exist
    has_phantom = (p * inner > nblocks)     # at most one extra (empty) block

    def in_index(pi, i):
        b = pi * inner + i
        if has_phantom:
            # Keep the DMA in-bounds; the phantom block's contribution is
            # zeroed by the row mask inside the kernel.
            b = jnp.minimum(b, nblocks - 1)
        return (b, 0)

    def _kernel(y_ref, yp_ref, out_ref):
        i = pl.program_id(1)

        @pl.when(i == 0)
        def _():
            out_ref[...] = jnp.zeros_like(out_ref)

        e = y_ref[...].astype(jnp.float32) - yp_ref[...].astype(jnp.float32)

        if needs_mask:
            # Pallas does NOT zero-fill clipped or re-read (phantom) blocks:
            # zero every row whose global index is past the end of the slab.
            b = pl.program_id(0) * inner + i
            row_ids = jax.lax.broadcasted_iota(jnp.int32, (tr, _LANES), 0)
            e = jnp.where(row_ids < (rows - b * tr), e, 0.0)

        # 2*e/(1+exp(-e)) - e  ==  e * tanh(e/2)   (single EUP push, robust)
        val = e * jnp.tanh(0.5 * e)

        # Fold the (tr, 128) tile into an (8, 128) per-lane partial sum (pure
        # vreg-aligned VALU adds, no cross-lane XLU work) and accumulate into
        # the resident lane-dense output block.
        out_ref[0] += jnp.sum(val.reshape(-1, _SUBLANES, _LANES), axis=0)

    tile_bytes = tr * _LANES * itemsize
    # 2 inputs x 2 pipeline buffers + output/scratch headroom.
    vmem_limit = int(2 * 2 * tile_bytes + (8 << 20))

    out = pl.pallas_call(
        _kernel,
        out_shape=jax.ShapeDtypeStruct((p, _SUBLANES, _LANES), jnp.float32),
        grid_spec=pltpu.PrefetchScalarGridSpec(
            num_scalar_prefetch=0,
            grid=(p, inner),
            in_specs=[
                pl.BlockSpec((tr, _LANES), in_index),
                pl.BlockSpec((tr, _LANES), in_index),
            ],
            out_specs=pl.BlockSpec(
                (1, _SUBLANES, _LANES), lambda pi, i: (pi, 0, 0)
            ),
        ),
        compiler_params=pltpu.CompilerParams(
            dimension_semantics=("parallel", "arbitrary"),
            vmem_limit_bytes=vmem_limit,
        ),
    )(ya, yb)

    total = jnp.sum(out)
    if reduction == "mean":
        total = total / n
    return total


def sigmoid_loss_ref(y_t, y_prime_t, reduction="mean"):
    e = y_t.astype(jnp.float32) - y_prime_t.astype(jnp.float32)
    val = 2.0 * e / (1.0 + jnp.exp(-e)) - e
    return jnp.mean(val) if reduction == "mean" else jnp.sum(val)


if __name__ == "__main__":
    key = jax.random.PRNGKey(0)
    k1, k2 = jax.random.split(key)

    # Primary small shape consistent with a dense prediction target, NCHW.
    shape = (2, 4, 16, 16)
    y_t = jax.random.normal(k1, shape, dtype=jnp.float32)
    y_prime_t = jax.random.normal(k2, shape, dtype=jnp.float32)

    for reduction in ("mean", "sum"):
        out = jax.block_until_ready(sigmoid_loss(y_t, y_prime_t, reduction=reduction))
        ref = sigmoid_loss_ref(y_t, y_prime_t, reduction=reduction)
        assert jnp.allclose(out, ref, rtol=1e-5, atol=1e-5), (reduction, out, ref)

    # Awkward (non-multiple-of-128) size exercises the rare pad fallback.
    k3, k4 = jax.random.split(k2)
    ya = jax.random.normal(k3, (3, 5, 7), dtype=jnp.float32)
    yb = jax.random.normal(k4, (3, 5, 7), dtype=jnp.float32)
    out = jax.block_until_ready(sigmoid_loss(ya, yb, reduction="mean"))
    ref = sigmoid_loss_ref(ya, yb, reduction="mean")
    assert jnp.allclose(out, ref, rtol=1e-5, atol=1e-5), ("odd-mean", out, ref)

    # n % 128 == 0 but rows not a tile multiple: no pad, in-kernel row mask,
    # multi-step grid with a clipped final block.
    yc = jax.random.normal(k3, (1, 3, 41, 128), dtype=jnp.float32)
    yd = jax.random.normal(k4, (1, 3, 41, 128), dtype=jnp.float32)
    out = jax.block_until_ready(sigmoid_loss(yc, yd, reduction="sum"))
    ref = sigmoid_loss_ref(yc, yd, reduction="sum")
    assert jnp.allclose(out, ref, rtol=1e-4, atol=1e-4), ("mask-sum", out, ref)

    # Large enough to trigger the dual-TensorCore split (p=2), with an uneven
    # block count (clamped phantom block + masked tail).
    ye = jax.random.normal(k3, (5, 8, 53, 128), dtype=jnp.float32)
    yf = jax.random.normal(k4, (5, 8, 53, 128), dtype=jnp.float32)
    out = jax.block_until_ready(sigmoid_loss(ye, yf, reduction="mean"))
    ref = sigmoid_loss_ref(ye, yf, reduction="mean")
    assert jnp.allclose(out, ref, rtol=1e-4, atol=1e-4), ("p2-mean", out, ref)

    # bf16 inputs stay bf16 in HBM (kernel upcasts per-tile to f32).
    yg = jax.random.normal(k3, shape, dtype=jnp.bfloat16)
    yh = jax.random.normal(k4, shape, dtype=jnp.bfloat16)
    out = jax.block_until_ready(sigmoid_loss(yg, yh, reduction="sum"))
    ref = sigmoid_loss_ref(yg, yh, reduction="sum")
    assert jnp.allclose(out, ref, rtol=2e-2, atol=2e-2), ("bf16-sum", out, ref)

    print("KERNEL_OK")
</pallas_src>

<mosaic_0001>
module attributes {stable_mosaic.version = 11 : i64} {
  func.func @_kernel(%arg0: i32, %arg1: i32, %arg2: memref<16x128xf32, #tpu.memory_space<vmem>>, %arg3: memref<16x128xf32, #tpu.memory_space<vmem>>, %arg4: memref<1x8x128xf32, #tpu.memory_space<vmem>>) attributes {dimension_semantics = [#tpu.dimension_semantics<parallel>, #tpu.dimension_semantics<arbitrary>], iteration_bounds = array<i64: 1, 1>, scalar_prefetch = 0 : i64, scratch_operands = 0 : i64, tpu.core_type = #tpu.core_type<tc>, window_params = [{transform_indices = @transform_0, window_bounds = array<i64: 16, 128>}, {transform_indices = @transform_1, window_bounds = array<i64: 16, 128>}, {transform_indices = @transform_2, window_bounds = array<i64: 1, 8, 128>}]} {
    %c0_i32 = arith.constant 0 : i32
    %0 = arith.cmpi eq, %arg1, %c0_i32 : i32
    %1 = arith.extui %0 : i1 to i32
    %c0_i32_0 = arith.constant 0 : i32
    %2 = arith.cmpi ne, %1, %c0_i32_0 : i32
    scf.if %2 {
      %cst_11 = arith.constant 0.000000e+00 : f32
      %18 = vector.broadcast %cst_11 : f32 to vector<1x8x128xf32>
      %c0_12 = arith.constant 0 : index
      %c0_13 = arith.constant 0 : index
      %c0_14 = arith.constant 0 : index
      %19 = vector.load %arg4[%c0_12, %c0_13, %c0_14] : memref<1x8x128xf32, #tpu.memory_space<vmem>>, vector<1x8x128xf32>
      tpu.vector_store %arg4[%c0_12, %c0_13, %c0_14], %18 {strides = array<i32>} : memref<1x8x128xf32, #tpu.memory_space<vmem>>, vector<1x8x128xf32>,
    } else {
    }
    %c0 = arith.constant 0 : index
    %c0_1 = arith.constant 0 : index
    %3 = vector.load %arg2[%c0, %c0_1] : memref<16x128xf32, #tpu.memory_space<vmem>>, vector<16x128xf32>
    %c0_2 = arith.constant 0 : index
    %c0_3 = arith.constant 0 : index
    %4 = vector.load %arg3[%c0_2, %c0_3] : memref<16x128xf32, #tpu.memory_space<vmem>>, vector<16x128xf32>
    %5 = arith.subf %3, %4 : vector<16x128xf32>
    %cst = arith.constant 5.000000e-01 : f32
    %6 = vector.broadcast %cst : f32 to vector<16x128xf32>
    %7 = arith.mulf %6, %5 : vector<16x128xf32>
    %8 = math.tanh %7 : vector<16x128xf32>
    %9 = arith.mulf %5, %8 : vector<16x128xf32>
    %c0_4 = arith.constant 0 : index
    %c0_5 = arith.constant 0 : index
    %c0_6 = arith.constant 0 : index
    %10 = vector.load %arg4[%c0_4, %c0_5, %c0_6] : memref<1x8x128xf32, #tpu.memory_space<vmem>>, vector<1x8x128xf32>
    %11 = vector.shape_cast %10 : vector<1x8x128xf32> to vector<8x128xf32>
    %12 = vector.shape_cast %9 : vector<16x128xf32> to vector<2x8x128xf32>
    %cst_7 = arith.constant dense<0.000000e+00> : vector<8x128xf32>
    %13 = vector.multi_reduction <add>, %12, %cst_7 [0] : vector<2x8x128xf32> to vector<8x128xf32>
    %14 = arith.addf %11, %13 : vector<8x128xf32>
    %c0_8 = arith.constant 0 : index
    %c0_9 = arith.constant 0 : index
    %c0_10 = arith.constant 0 : index
    %15 = vector.load %arg4[%c0_8, %c0_9, %c0_10] : memref<1x8x128xf32, #tpu.memory_space<vmem>>, vector<1x8x128xf32>
    %16 = vector.shape_cast %15 : vector<1x8x128xf32> to vector<8x128xf32>
    %17 = vector.shape_cast %14 : vector<8x128xf32> to vector<1x8x128xf32>
    tpu.vector_store %arg4[%c0_8, %c0_9, %c0_10], %17 {strides = array<i32>} : memref<1x8x128xf32, #tpu.memory_space<vmem>>, vector<1x8x128xf32>,
    return
  }
  func.func @transform_0(%arg0: i32, %arg1: i32) -> (i32, i32) {
    %c1_i32 = arith.constant 1 : i32
    %0 = arith.muli %arg0, %c1_i32 : i32
    %1 = arith.addi %0, %arg1 : i32
    %c0_i32 = arith.constant 0 : i32
    %c0_i32_0 = arith.constant 0 : i32
    return %1, %c0_i32 : i32, i32
  }
  func.func @transform_1(%arg0: i32, %arg1: i32) -> (i32, i32) {
    %c1_i32 = arith.constant 1 : i32
    %0 = arith.muli %arg0, %c1_i32 : i32
    %1 = arith.addi %0, %arg1 : i32
    %c0_i32 = arith.constant 0 : i32
    %c0_i32_0 = arith.constant 0 : i32
    return %1, %c0_i32 : i32, i32
  }
  func.func @transform_2(%arg0: i32, %arg1: i32) -> (i32, i32, i32) {
    %c0_i32 = arith.constant 0 : i32
    %c0_i32_0 = arith.constant 0 : i32
    %c0_i32_1 = arith.constant 0 : i32
    return %arg0, %c0_i32, %c0_i32_0 : i32, i32, i32
  }
}

</mosaic_0001>

<llo_original>
// kernel: tpu_custom_call.1
$region0: #{tpu_custom_call.1}
  #allocation0 [shape = 'u32[]', space=smem, size = 0x4, offset = 0x4, fixed_abs, tag = 'smem constant byte address 0x4 - core index']
  #allocation1 [shape = 'u32[144,128]{1,0:T(1,128)}', space=vmem, size = 0x12000, scoped, tag = 'internal scratch']
  %s0 = inlined_call_operand.hbm [shape: f32[16,128], index: 0, kind: input, shape index: {}]
  %s1 = inlined_call_operand.hbm [shape: f32[16,128], index: 1, kind: input, shape index: {}]
  %s2 = inlined_call_operand.hbm [shape: f32[1,8,128], index: 2, kind: output, shape index: {}]
  %s3 = sld [smem:[#allocation0]]
  $region30: #{tpu_custom_call.1} parent=0
    _
  %s5 = ssub.s32 1, %s3
  %s6 = scalar_select 0, %s5, %s3
  $region1: #{tpu_custom_call.1} parent=0
    #allocation2 [shape = 'u8[8192]{0}', space=vmem, size = 0x2000, scoped, tag = 'input window, operand 0, single buffered']
    #allocation3 [shape = 's32[1]{0}', space=sflag, size = 0x4, scoped, tag = 'scoped memory for tpu_custom_call.1']
    #allocation4 [shape = 's32[1]{0}', space=sflag, size = 0x4, scoped, tag = 'scoped memory for tpu_custom_call.1']
    #allocation5 [shape = 'u8[8192]{0}', space=vmem, size = 0x2000, scoped, tag = 'input window, operand 1, single buffered']
    #allocation6 [shape = 's32[1]{0}', space=sflag, size = 0x4, scoped, tag = 'scoped memory for tpu_custom_call.1']
    #allocation7 [shape = 'u8[4096]{0}', space=vmem, size = 0x1000, scoped, tag = 'output window, operand 0, single buffered']
    %7 = vsyncpa [#allocation3], 0
    %8 = vsyncpa [#allocation6], 0
    %9 = vsyncpa [#allocation4], 0
    // Predicated region
    $region2: #{tpu_custom_call.1} parent=1 // pred_check
      _
    $region3: #{tpu_custom_call.1} parent=1 // pred_check_branch
      %11 = sbr.rel (0) target = $region5
    $region4: #{tpu_custom_call.1} parent=1 // pred_region
      %s12 = sadd.s32 0, 0
      %s13 = smul.u32 2, %s12
      %s15 = ssub.s32 256, 256
      %16 = vsyncadd [#allocation3], %s15
      %s17 = smul.addr %s13, 128
      %s18 = scalar_lea.hbm %s0, %s17
      %s19 = sshll.u32 [#allocation2], 4
      %s20 = int_to_ptr.vmem [resolvable:$true] %s19
      %25 = dma.hbm_to_vmem [thread:$0]  %s18, 256, %s20, [#allocation3], 128, 128, 8
    $region5: #{tpu_custom_call.1} parent=1 // pred_fallthru
      _
    // Predicated region
    $region6: #{tpu_custom_call.1} parent=1 // pred_check
      _
    $region7: #{tpu_custom_call.1} parent=1 // pred_check_branch
      %27 = sbr.rel (0) target = $region9
    $region8: #{tpu_custom_call.1} parent=1 // pred_region
      %s28 = sadd.s32 0, 0
      %s29 = smul.u32 2, %s28
      %s31 = ssub.s32 256, 256
      %32 = vsyncadd [#allocation6], %s31
      %s33 = smul.addr %s29, 128
      %s34 = scalar_lea.hbm %s1, %s33
      %s35 = sshll.u32 [#allocation5], 4
      %s36 = int_to_ptr.vmem [resolvable:$true] %s35
      %41 = dma.hbm_to_vmem [thread:$0]  %s34, 256, %s36, [#allocation6], 128, 128, 8
    $region9: #{tpu_custom_call.1} parent=1 // pred_fallthru
      _
    // Predicated region
    $region10: #{tpu_custom_call.1} parent=1 // pred_check
      _
    $region11: #{tpu_custom_call.1} parent=1 // pred_check_branch
      %43 = sbr.rel (0) target = $region13
    $region12: #{tpu_custom_call.1} parent=1 // pred_region
      %44 = dma.done [#allocation3], 256
    $region13: #{tpu_custom_call.1} parent=1 // pred_fallthru
      _
    // Predicated region
    $region14: #{tpu_custom_call.1} parent=1 // pred_check
      _
    $region15: #{tpu_custom_call.1} parent=1 // pred_check_branch
      %46 = sbr.rel (0) target = $region17
    $region16: #{tpu_custom_call.1} parent=1 // pred_region
      %47 = dma.done [#allocation6], 256
    $region17: #{tpu_custom_call.1} parent=1 // pred_fallthru
      _
    %s48 = sadd.s32 0, 0
    %s49 = smul.u32 2, %s48
    %s50 = sadd.s32 0, 0
    %s51 = smul.u32 2, %s50
    %p52 = scmp.eq.s32.totalorder 0, 0
    // Predicated region
    $region18: #{tpu_custom_call.1} parent=1 // pred_check
      %p53 = pneg %p52
    $region19: #{tpu_custom_call.1} parent=1 // pred_check_branch
      %55 = sbr.rel (%p53) target = $region21
    $region20: #{tpu_custom_call.1} parent=1 // pred_region
      %56 = vst [vmem:[#allocation7] sm:$0xff] 0.0
    $region21: #{tpu_custom_call.1} parent=1 // pred_fallthru
      _
    %v57 = vld [vmem:[#allocation2] sm:$0xff]
    %v58 = vld [vmem:[#allocation2 + $0x8] sm:$0xff]
    %v59 = vld [vmem:[#allocation5] sm:$0xff]
    %v60 = vld [vmem:[#allocation5 + $0x8] sm:$0xff]
    %v61 = vsub.f32 %v57, %v59
    %v62 = vsub.f32 %v58, %v60
    %v63 = vmul.f32 %v61, 0.5
    %v64 = vmul.f32 %v62, 0.5
    %v65 = vtanh.pop %v63
    %v66 = vtanh.pop %v64
    %v67 = vmul.f32 %v61, %v65
    %v68 = vmul.f32 %v62, %v66
    %v69 = vld [vmem:[#allocation7] sm:$0xff]
    %v70 = vadd.f32 %v67, %v68
    %v71 = vadd.f32 %v69, %v70
    %72 = vst [vmem:[#allocation7] sm:$0xff] %v71
    // Predicated region
    $region22: #{tpu_custom_call.1} parent=1 // pred_check
      _
    $region23: #{tpu_custom_call.1} parent=1 // pred_check_branch
      %74 = sbr.rel (0) target = $region25
    $region24: #{tpu_custom_call.1} parent=1 // pred_region
      %s76 = ssub.s32 128, 128
      %77 = vsyncadd [#allocation4], %s76
      %s79 = sshll.u32 [#allocation7], 4
      %s80 = int_to_ptr.vmem [resolvable:$true] %s79
      %82 = dma.vmem_to_hbm [thread:$0]  %s80, 128, %s2, [#allocation4]
    $region25: #{tpu_custom_call.1} parent=1 // pred_fallthru
      _
    // Predicated region
    $region26: #{tpu_custom_call.1} parent=1 // pred_check
      _
    $region27: #{tpu_custom_call.1} parent=1 // pred_check_branch
      %84 = sbr.rel (0) target = $region29
    $region28: #{tpu_custom_call.1} parent=1 // pred_region
      %85 = dma.done [#allocation4], 128
    $region29: #{tpu_custom_call.1} parent=1 // pred_fallthru
      _
    %86 = vsyncpa [#allocation3], 1
    %87 = vsyncpa [#allocation6], 1
    %88 = vsyncpa [#allocation4], 1

</llo_original>
